<compile_context>
chip_gen: v6e
topology: v6e:2x2x1
jax: 0.10.0
libtpu: 0.0.40
codegen_flags: <defaults>
</compile_context>

<pallas_src>
import functools
import math

import jax
import jax.numpy as jnp
from jax import lax
from jax.experimental import pallas as pl
from jax.experimental.pallas import tpu as pltpu

D_MODEL = 32
VOCAB = 128
TOKEN_BLOCK_TARGET = 512   # tokens per grid step (lane axis); sweep 256/512/1024


def _round_up(x, m):
    return (x + m - 1) // m * m


# ---------------------------- the Pallas kernel ----------------------------
def embeddings_kernel(ids_ref, table_t_ref, o_ref, *, scale):
    """One grid step: gather TB token embeddings via a one-hot MXU matmul.

    ids_ref:     (1, TB)     int32, token axis on lanes
    table_t_ref: (Dpad, V)   transposed embedding table, resident across steps
    o_ref:       (Dpad, TB)  transposed output block, lane-dense in tokens
    """
    d_pad, vocab = table_t_ref.shape
    tb = ids_ref.shape[1]

    ids = ids_ref[...]                                            # (1, TB)
    # Transposed one-hot: one_hot_t[v, t] = (v == ids[t]).  Cast to the table
    # dtype (exact for 0/1) so a bf16 table gives one native bf16 MXU pass.
    vocab_iota = lax.broadcasted_iota(jnp.int32, (vocab, tb), 0)
    one_hot_t = (vocab_iota == ids).astype(table_t_ref.dtype)      # (V, TB)

    emb_t = jnp.dot(table_t_ref[...], one_hot_t,
                    preferred_element_type=jnp.float32)            # (Dpad, TB)
    o_ref[...] = (emb_t * jnp.float32(scale)).astype(o_ref.dtype)


# ------------------------------ python wrapper ------------------------------
@jax.jit
def embeddings(ids, table):
    """ids: [B, T] int, table: [V, D]  ->  [B, T, D] = table[ids] * sqrt(D)."""
    B, T = ids.shape
    V, D = table.shape
    N = B * T

    # Fat, lane-dense token block: multiple of 128, capped at the target, and
    # sized so realistic N still gets >= 2 grid steps (v7x: 2 TensorCores).
    tb = int(min(TOKEN_BLOCK_TARGET, _round_up(max(pl.cdiv(N, 2), 128), 128)))
    n_blocks = pl.cdiv(N, tb)
    n_pad = n_blocks * tb

    # Clamp ids (matches jnp.take's clip behaviour; avoids silent zero rows
    # from an all-zero one-hot on out-of-range ids).
    flat = jnp.clip(ids.reshape(N).astype(jnp.int32), 0, V - 1)
    if n_pad != N:
        flat = jnp.pad(flat, (0, n_pad - N))      # padded tokens -> row 0, sliced off below
    ids_row = flat.reshape(1, n_pad)              # token axis on lanes

    # Transposed (and sublane-padded) table: [Dpad, V], DMA'd once and kept
    # resident in VMEM via a constant index_map.
    d_pad = _round_up(D, 8)
    table_t = table.T
    if d_pad != D:
        table_t = jnp.pad(table_t, ((0, d_pad - D), (0, 0)))

    # VMEM budget gate for the resident-table design (v7x: 64 MiB physical).
    itemsize = jnp.dtype(table.dtype).itemsize
    resident_bytes = d_pad * V * itemsize                               # table^T
    stream_bytes = 2 * (tb * 4 + d_pad * tb * itemsize) + V * tb * 4    # dbl-buffered blocks + one-hot
    need_bytes = resident_bytes + stream_bytes
    if need_bytes > 24 * 1024 * 1024:
        # TODO(synk): scalar-prefetch per-row DMA gather path for vocab tables
        # too large to keep resident in VMEM (needed on v7x's 64 MiB VMEM).
        raise NotImplementedError("embedding table too large for resident-VMEM kernel")

    cp_kwargs = {"dimension_semantics": ("parallel",)}
    if need_bytes > 12 * 1024 * 1024:             # v5e scoped default is 16 MiB
        cp_kwargs["vmem_limit_bytes"] = int(min(2 * need_bytes, 48 * 1024 * 1024))

    out_t = pl.pallas_call(
        functools.partial(embeddings_kernel, scale=math.sqrt(D)),
        out_shape=jax.ShapeDtypeStruct((d_pad, n_pad), table.dtype),
        grid=(n_blocks,),
        in_specs=[
            pl.BlockSpec((1, tb), lambda g: (0, g)),        # ids, lane-dense
            pl.BlockSpec((d_pad, V), lambda g: (0, 0)),     # table^T, resident
        ],
        out_specs=pl.BlockSpec((d_pad, tb), lambda g: (0, g)),
        compiler_params=pltpu.CompilerParams(**cp_kwargs),
    )(ids_row, table_t)

    # [Dpad, N_pad] -> [B, T, D].  In a real model the consumer could take the
    # lane-dense [D, N] layout directly and fuse/skip this transpose.
    return out_t[:D, :N].T.reshape(B, T, D)


# ------------------------- pure-JAX reference (check) -------------------------
def _reference(ids, table):
    d_model = table.shape[1]
    return jnp.take(table, ids, axis=0) * jnp.float32(math.sqrt(d_model))


# ----------------------------------- main -----------------------------------
if __name__ == "__main__":
    key = jax.random.PRNGKey(0)
    k_ids, k_tab = jax.random.split(key, 2)

    B, T = 2, 8
    ids = jax.random.randint(k_ids, (B, T), 0, VOCAB, dtype=jnp.int32)
    table = jax.random.normal(k_tab, (VOCAB, D_MODEL), jnp.float32)

    out = jax.block_until_ready(embeddings(ids, table))
    ref = _reference(ids, table)

    assert out.shape == (B, T, D_MODEL)
    assert jnp.allclose(out, ref, atol=1e-6, rtol=1e-6), "mismatch vs reference"

    print("KERNEL_OK")
</pallas_src>

<mosaic_0001>
module attributes {stable_mosaic.version = 11 : i64} {
  func.func @embeddings_kernel(%arg0: i32, %arg1: memref<1x128xi32, #tpu.memory_space<vmem>>, %arg2: memref<32x128xf32, #tpu.memory_space<vmem>>, %arg3: memref<32x128xf32, #tpu.memory_space<vmem>>) attributes {dimension_semantics = [#tpu.dimension_semantics<parallel>], iteration_bounds = array<i64: 1>, scalar_prefetch = 0 : i64, scratch_operands = 0 : i64, tpu.core_type = #tpu.core_type<tc>, window_params = [{transform_indices = @transform_0, window_bounds = array<i64: 1, 128>}, {pipeline_mode = #tpu.pipeline_mode<synchronous>, transform_indices = @transform_1, window_bounds = array<i64: 32, 128>}, {transform_indices = @transform_2, window_bounds = array<i64: 32, 128>}]} {
    %c0 = arith.constant 0 : index
    %c0_0 = arith.constant 0 : index
    %0 = vector.load %arg1[%c0, %c0_0] : memref<1x128xi32, #tpu.memory_space<vmem>>, vector<1x128xi32>
    %1 = tpu.iota {dimensions = array<i32: 0>} : vector<128x128xi32>
    %2 = vector.broadcast %0 : vector<1x128xi32> to vector<128x128xi32>
    %3 = arith.cmpi eq, %1, %2 : vector<128x128xi32>
    %4 = arith.extui %3 : vector<128x128xi1> to vector<128x128xi32>
    %5 = arith.sitofp %4 : vector<128x128xi32> to vector<128x128xf32>
    %c0_1 = arith.constant 0 : index
    %c0_2 = arith.constant 0 : index
    %6 = vector.load %arg2[%c0_1, %c0_2] : memref<32x128xf32, #tpu.memory_space<vmem>>, vector<32x128xf32>
    %cst = arith.constant dense<0.000000e+00> : vector<32x128xf32>
    %7 = tpu.matmul %6, %5, %cst {dimension_numbers = #tpu.dot_dimension_numbers<[1], [0], [0], [1], [0, 0, 1, 1], [], []>} : vector<32x128xf32>, vector<128x128xf32>, vector<32x128xf32> -> vector<32x128xf32>
    %cst_3 = arith.constant 5.65685415 : f32
    %8 = vector.broadcast %cst_3 : f32 to vector<32x128xf32>
    %9 = arith.mulf %7, %8 : vector<32x128xf32>
    %c0_4 = arith.constant 0 : index
    %c0_5 = arith.constant 0 : index
    %10 = vector.load %arg3[%c0_4, %c0_5] : memref<32x128xf32, #tpu.memory_space<vmem>>, vector<32x128xf32>
    tpu.vector_store %arg3[%c0_4, %c0_5], %9 {strides = array<i32>} : memref<32x128xf32, #tpu.memory_space<vmem>>, vector<32x128xf32>,
    return
  }
  func.func @transform_0(%arg0: i32) -> (i32, i32) {
    %c0_i32 = arith.constant 0 : i32
    %c0_i32_0 = arith.constant 0 : i32
    return %c0_i32, %arg0 : i32, i32
  }
  func.func @transform_1(%arg0: i32) -> (i32, i32) {
    %c0_i32 = arith.constant 0 : i32
    %c0_i32_0 = arith.constant 0 : i32
    %c0_i32_1 = arith.constant 0 : i32
    return %c0_i32, %c0_i32_0 : i32, i32
  }
  func.func @transform_2(%arg0: i32) -> (i32, i32) {
    %c0_i32 = arith.constant 0 : i32
    %c0_i32_0 = arith.constant 0 : i32
    return %c0_i32, %arg0 : i32, i32
  }
}

</mosaic_0001>

<llo_original>
// kernel: embeddings.1
$region0: #{embeddings.1}
  #allocation0 [shape = 'u32[]', space=smem, size = 0x4, offset = 0x4, fixed_abs, tag = 'smem constant byte address 0x4 - core index']
  #allocation1 [shape = 'u32[144,128]{1,0:T(1,128)}', space=vmem, size = 0x12000, scoped, tag = 'internal scratch']
  %s0 = inlined_call_operand.vmem [shape: s32[1,128], index: 0, kind: input, shape index: {}]
  %s1 = inlined_call_operand.hbm [shape: f32[32,128], index: 1, kind: input, shape index: {}]
  %s2 = inlined_call_operand.vmem [shape: f32[32,128], index: 2, kind: output, shape index: {}]
  %s3 = sld [smem:[#allocation0]]
  $region22: #{embeddings.1} parent=0
    _
  %s5 = ssub.s32 1, %s3
  %s6 = scalar_select 0, %s5, %s3
  $region1: #{embeddings.1} parent=0
    #allocation2 [shape = 'u8[16384]{0}', space=vmem, size = 0x4000, scoped, tag = 'input window, operand 1, single buffered']
    #allocation3 [shape = 's32[1]{0}', space=sflag, size = 0x4, scoped, tag = 'scoped memory for embeddings.1']
    %7 = vsyncpa [#allocation3], 0
    // Predicated region
    $region2: #{embeddings.1} parent=1 // pred_check
      _
    $region3: #{embeddings.1} parent=1 // pred_check_branch
      %9 = sbr.rel (0) target = $region5
    $region4: #{embeddings.1} parent=1 // pred_region
      _
    $region5: #{embeddings.1} parent=1 // pred_fallthru
      _
    // Predicated region
    $region6: #{embeddings.1} parent=1 // pred_check
      _
    $region7: #{embeddings.1} parent=1 // pred_check_branch
      %11 = sbr.rel (0) target = $region9
    $region8: #{embeddings.1} parent=1 // pred_region
      %s13 = ssub.s32 512, 512
      %14 = vsyncadd [#allocation3], %s13
      %s15 = sshll.u32 [#allocation2], 4
      %s16 = int_to_ptr.vmem [resolvable:$true] %s15
      %21 = dma.hbm_to_vmem [thread:$0]  %s1, 512, %s16, [#allocation3], 128, 128, 8
    $region9: #{embeddings.1} parent=1 // pred_fallthru
      _
    // Predicated region
    $region10: #{embeddings.1} parent=1 // pred_check
      _
    $region11: #{embeddings.1} parent=1 // pred_check_branch
      %23 = sbr.rel (0) target = $region13
    $region12: #{embeddings.1} parent=1 // pred_region
      %24 = dma.done [#allocation3], 512
    $region13: #{embeddings.1} parent=1 // pred_fallthru
      _
    %v25 = vld [vmem:[%s0] sm:$0x1]
    %v26 = vlaneseq
    %v27 = vshrl.u32 %v26, 7
    %v28 = vadd.s32 %v27, 8
    %v29 = vadd.s32 %v27, 16
    %v30 = vadd.s32 %v27, 24
    %v31 = vadd.s32 %v27, 32
    %v32 = vadd.s32 %v27, 40
    %v33 = vadd.s32 %v27, 48
    %v34 = vadd.s32 %v27, 56
    %v35 = vadd.s32 %v27, 64
    %v36 = vadd.s32 %v27, 72
    %v37 = vadd.s32 %v27, 80
    %v38 = vadd.s32 %v27, 88
    %v39 = vadd.s32 %v27, 96
    %v40 = vadd.s32 %v27, 104
    %v41 = vadd.s32 %v27, 112
    %v42 = vadd.s32 %v27, 120
    %v43 = vlaneseq
    %v44 = vshrl.u32 %v43, 7
    %v45 = vsub.s32 0, %v44
    %v46 = vrot.slane %v25, %v45
    %vm47 = vcmp.eq.s32.totalorder %v27, %v46
    %vm48 = vcmp.eq.s32.totalorder %v28, %v46
    %vm49 = vcmp.eq.s32.totalorder %v29, %v46
    %vm50 = vcmp.eq.s32.totalorder %v30, %v46
    %vm51 = vcmp.eq.s32.totalorder %v31, %v46
    %vm52 = vcmp.eq.s32.totalorder %v32, %v46
    %vm53 = vcmp.eq.s32.totalorder %v33, %v46
    %vm54 = vcmp.eq.s32.totalorder %v34, %v46
    %vm55 = vcmp.eq.s32.totalorder %v35, %v46
    %vm56 = vcmp.eq.s32.totalorder %v36, %v46
    %vm57 = vcmp.eq.s32.totalorder %v37, %v46
    %vm58 = vcmp.eq.s32.totalorder %v38, %v46
    %vm59 = vcmp.eq.s32.totalorder %v39, %v46
    %vm60 = vcmp.eq.s32.totalorder %v40, %v46
    %vm61 = vcmp.eq.s32.totalorder %v41, %v46
    %vm62 = vcmp.eq.s32.totalorder %v42, %v46
    %v63 = vsel %vm47, 1, 0
    %v64 = vsel %vm48, 1, 0
    %v65 = vsel %vm49, 1, 0
    %v66 = vsel %vm50, 1, 0
    %v67 = vsel %vm51, 1, 0
    %v68 = vsel %vm52, 1, 0
    %v69 = vsel %vm53, 1, 0
    %v70 = vsel %vm54, 1, 0
    %v71 = vsel %vm55, 1, 0
    %v72 = vsel %vm56, 1, 0
    %v73 = vsel %vm57, 1, 0
    %v74 = vsel %vm58, 1, 0
    %v75 = vsel %vm59, 1, 0
    %v76 = vsel %vm60, 1, 0
    %v77 = vsel %vm61, 1, 0
    %v78 = vsel %vm62, 1, 0
    %v79 = vcvt.s32.f32 %v63
    %v80 = vcvt.s32.f32 %v64
    %v81 = vcvt.s32.f32 %v65
    %v82 = vcvt.s32.f32 %v66
    %v83 = vcvt.s32.f32 %v67
    %v84 = vcvt.s32.f32 %v68
    %v85 = vcvt.s32.f32 %v69
    %v86 = vcvt.s32.f32 %v70
    %v87 = vcvt.s32.f32 %v71
    %v88 = vcvt.s32.f32 %v72
    %v89 = vcvt.s32.f32 %v73
    %v90 = vcvt.s32.f32 %v74
    %v91 = vcvt.s32.f32 %v75
    %v92 = vcvt.s32.f32 %v76
    %v93 = vcvt.s32.f32 %v77
    %v94 = vcvt.s32.f32 %v78
    %v95 = vld [vmem:[#allocation2] sm:$0xff]
    %v96 = vld [vmem:[#allocation2 + $0x8] sm:$0xff]
    %v97 = vld [vmem:[#allocation2 + $0x10] sm:$0xff]
    %v98 = vld [vmem:[#allocation2 + $0x18] sm:$0xff]
    %99 = vmatprep.subr.mxu0 0.0
    %100 = vmatpush1.msra.mxu0 %v94
    %101 = vmatprep.subr.mxu0 0.0
    %102 = vmatpush1.msra.mxu0 %v93
    %103 = vmatprep.subr.mxu0 0.0
    %104 = vmatpush1.msra.mxu0 %v92
    %105 = vmatprep.subr.mxu0 0.0
    %106 = vmatpush1.msra.mxu0 %v91
    %107 = vmatprep.subr.mxu0 0.0
    %108 = vmatpush1.msra.mxu0 %v90
    %109 = vmatprep.subr.mxu0 0.0
    %110 = vmatpush1.msra.mxu0 %v89
    %111 = vmatprep.subr.mxu0 0.0
    %112 = vmatpush1.msra.mxu0 %v88
    %113 = vmatprep.subr.mxu0 0.0
    %114 = vmatpush1.msra.mxu0 %v87
    %115 = vmatprep.subr.mxu0 0.0
    %116 = vmatpush1.msra.mxu0 %v86
    %117 = vmatprep.subr.mxu0 0.0
    %118 = vmatpush1.msra.mxu0 %v85
    %119 = vmatprep.subr.mxu0 0.0
    %120 = vmatpush1.msra.mxu0 %v84
    %121 = vmatprep.subr.mxu0 0.0
    %122 = vmatpush1.msra.mxu0 %v83
    %123 = vmatprep.subr.mxu0 0.0
    %124 = vmatpush1.msra.mxu0 %v82
    %125 = vmatprep.subr.mxu0 0.0
    %126 = vmatpush1.msra.mxu0 %v81
    %127 = vmatprep.subr.mxu0 0.0
    %128 = vmatpush1.msra.mxu0 %v80
    %129 = vmatprep.subr.mxu0 0.0
    %130 = vmatpush1.msra.mxu0 %v79
    %131 = vmatprep.subr.mxu0 0.0
    %132 = vmatpush2.msra.mxu0 0.0
    %133 = vmatprep.subr.mxu0 0.0
    %134 = vmatpush2.msra.mxu0 0.0
    %135 = vmatprep.subr.mxu0 0.0
    %136 = vmatpush2.msra.mxu0 0.0
    %137 = vmatprep.subr.mxu0 0.0
    %138 = vmatpush2.msra.mxu0 0.0
    %139 = vmatprep.subr.mxu0 0.0
    %140 = vmatpush2.msra.mxu0 0.0
    %141 = vmatprep.subr.mxu0 0.0
    %142 = vmatpush2.msra.mxu0 0.0
    %143 = vmatprep.subr.mxu0 0.0
    %144 = vmatpush2.msra.mxu0 0.0
    %145 = vmatprep.subr.mxu0 0.0
    %146 = vmatpush2.msra.mxu0 0.0
    %147 = vmatprep.subr.mxu0 0.0
    %148 = vmatpush2.msra.mxu0 0.0
    %149 = vmatprep.subr.mxu0 0.0
    %150 = vmatpush2.msra.mxu0 0.0
    %151 = vmatprep.subr.mxu0 0.0
    %152 = vmatpush2.msra.mxu0 0.0
    %153 = vmatprep.subr.mxu0 0.0
    %154 = vmatpush2.msra.mxu0 0.0
    %155 = vmatprep.subr.mxu0 0.0
    %156 = vmatpush2.msra.mxu0 0.0
    %157 = vmatprep.subr.mxu0 0.0
    %158 = vmatpush2.msra.mxu0 0.0
    %159 = vmatprep.subr.mxu0 0.0
    %160 = vmatpush2.msra.mxu0 0.0
    %161 = vmatprep.subr.mxu0 0.0
    %162 = vmatpush2.msra.mxu0 0.0
    %163 = vmatprep.mubr.f32.mxu0 0.0
    %164 = vmatmul.mubr.f32.gmra.mxu0 %v95
    %v165 = vpop.f32.mrf.mxu0
    %v166 = vadd.f32 0.0, %v165
    %v167 = vpop.f32.mrf.mxu0
    %168 = vmatprep.mubr.f32.mxu0 0.0
    %169 = vmatmul.mubr.f32.gmra.mxu0 %v96
    %v170 = vpop.f32.mrf.mxu0
    %v171 = vadd.f32 0.0, %v170
    %v172 = vpop.f32.mrf.mxu0
    %173 = vmatprep.mubr.f32.mxu0 0.0
    %174 = vmatmul.mubr.f32.gmra.mxu0 %v97
    %v175 = vpop.f32.mrf.mxu0
    %v176 = vadd.f32 0.0, %v175
    %v177 = vpop.f32.mrf.mxu0
    %178 = vmatprep.mubr.f32.mxu0 0.0
    %179 = vmatmul.mubr.f32.gmra.mxu0 %v98
    %v180 = vpop.f32.mrf.mxu0
    %v181 = vadd.f32 0.0, %v180
    %v182 = vpop.f32.mrf.mxu0
    %183 = vdwg.mxu0
    %v184 = vmul.f32 %v166, 5.656854
    %v185 = vmul.f32 %v171, 5.656854
    %v186 = vmul.f32 %v176, 5.656854
    %v187 = vmul.f32 %v181, 5.656854
    %188 = vst [vmem:[%s2] sm:$0xff] %v184
    %189 = vst [vmem:[%s2 + $0x8] sm:$0xff] %v185
    %190 = vst [vmem:[%s2 + $0x10] sm:$0xff] %v186
    %191 = vst [vmem:[%s2 + $0x18] sm:$0xff] %v187
    // Predicated region
    $region14: #{embeddings.1} parent=1 // pred_check
      _
    $region15: #{embeddings.1} parent=1 // pred_check_branch
      %193 = sbr.rel (0) target = $region17
    $region16: #{embeddings.1} parent=1 // pred_region
      _
    $region17: #{embeddings.1} parent=1 // pred_fallthru
      _
    // Predicated region
    $region18: #{embeddings.1} parent=1 // pred_check
      _
    $region19: #{embeddings.1} parent=1 // pred_check_branch
      %195 = sbr.rel (0) target = $region21
    $region20: #{embeddings.1} parent=1 // pred_region
      _
    $region21: #{embeddings.1} parent=1 // pred_fallthru
      _
    %196 = vsyncpa [#allocation3], 1

</llo_original>
